<compile_context>
chip_gen: v5e
topology: v5e:2x2
jax: 0.10.0
libtpu: 0.0.40
codegen_flags: <defaults>
</compile_context>

<pallas_src>
import functools

import jax
import jax.numpy as jnp
from jax.experimental import pallas as pl
from jax.experimental.pallas import tpu as pltpu


def _local_linear_kernel(x_ref, w_ref, b_ref, o_ref, wexp_ref, *, stride, padding):
    # x_ref:    (B, in_features)              raw (unpadded) input
    # w_ref:    (fold_num, K, L)              per-fold weights
    # b_ref:    (1, fold_num * L)             flattened bias
    # o_ref:    (B, fold_num * L)             lane-dense output slab
    # wexp_ref: (in_features, fold_num * L)   VMEM scratch: unfold-fused weight
    fold_num, K, L = w_ref.shape
    in_features = x_ref.shape[1]

    # Build the expanded weight: column block f holds w[f] on exactly the input rows
    # fold f reads; rows that would hit the zero padding are dropped (they'd multiply 0).
    wexp_ref[...] = jnp.zeros_like(wexp_ref)
    for f in range(fold_num):                      # static Python loop, unrolled at trace
        r0 = f * stride - padding                  # first (unpadded) input row of fold f
        k_lo = max(0, -r0)
        k_hi = min(K, in_features - r0)
        if k_hi > k_lo:
            wexp_ref[r0 + k_lo:r0 + k_hi, f * L:(f + 1) * L] = w_ref[f][k_lo:k_hi, :]

    # One MXU matmul covering all folds, + bias, one lane-dense store.
    acc = jnp.dot(x_ref[...], wexp_ref[...], preferred_element_type=jnp.float32)
    o_ref[...] = (acc + b_ref[...]).astype(o_ref.dtype)


def local_linear(x, weight, bias, *, kernel_size, padding, stride):
    """Pallas implementation of LocalLinear.forward.

    x:      (batch, in_features)
    weight: (fold_num, kernel_size, local_features)
    bias:   (fold_num, local_features)
    returns (batch, fold_num, local_features)
    """
    B, in_features = x.shape
    fold_num, K, L = weight.shape
    assert K == kernel_size
    # PyTorch's unfold would error if folds over-ran the padded input; a JAX gather
    # would silently clip instead, so enforce the same coverage condition here.
    assert (fold_num - 1) * stride + kernel_size <= in_features + 2 * padding

    bias_flat = bias.reshape(1, fold_num * L)      # contiguous reshape, no data movement

    out_flat = pl.pallas_call(
        functools.partial(_local_linear_kernel, stride=stride, padding=padding),
        out_shape=jax.ShapeDtypeStruct((B, fold_num * L), x.dtype),
        in_specs=[
            pl.BlockSpec(memory_space=pltpu.MemorySpace.VMEM),   # x, whole array
            pl.BlockSpec(memory_space=pltpu.MemorySpace.VMEM),   # weight, whole array
            pl.BlockSpec(memory_space=pltpu.MemorySpace.VMEM),   # bias, whole array
        ],
        out_specs=pl.BlockSpec(memory_space=pltpu.MemorySpace.VMEM),
        scratch_shapes=[pltpu.VMEM((in_features, fold_num * L), weight.dtype)],
    )(x, weight, bias_flat)

    # (B, F*L) -> (B, F, L): contiguous (free) reshape; replaces the old transpose.
    return out_flat.reshape(B, fold_num, L)


def local_linear_ref(x, weight, bias, *, kernel_size, padding, stride):
    """Pure-JAX reference mirroring the PyTorch forward."""
    fold_num = weight.shape[0]
    x_pad = jnp.pad(x, ((0, 0), (padding, padding)))
    starts = jnp.arange(fold_num) * stride
    idx = starts[:, None] + jnp.arange(kernel_size)[None, :]
    x_unf = x_pad[:, idx]                                  # (B, F, K)
    return jnp.einsum('bfk,fkl->bfl', x_unf, weight) + bias[None]


if __name__ == "__main__":
    # Module config (small, consistent with LocalLinear.__init__)
    in_features = 16
    local_features = 32
    kernel_size = 4
    padding = 2
    stride = 2
    batch = 8
    fold_num = (in_features + 2 * padding - kernel_size) // stride + 1  # = 9

    key = jax.random.PRNGKey(0)
    kx, kw, kb = jax.random.split(key, 3)
    x = jax.random.normal(kx, (batch, in_features), jnp.float32)
    # deterministic "randn" init for the parameters (as in the module's __init__)
    weight = jax.random.normal(kw, (fold_num, kernel_size, local_features), jnp.float32)
    bias = jax.random.normal(kb, (fold_num, local_features), jnp.float32)

    out = local_linear(x, weight, bias,
                       kernel_size=kernel_size, padding=padding, stride=stride)
    jax.block_until_ready(out)

    ref = local_linear_ref(x, weight, bias,
                           kernel_size=kernel_size, padding=padding, stride=stride)

    assert out.shape == (batch, fold_num, local_features), out.shape
    assert jnp.allclose(out, ref, atol=1e-5, rtol=1e-5), "mismatch vs reference"
    print("KERNEL_OK")
</pallas_src>

<mosaic_0001>
module attributes {stable_mosaic.version = 11 : i64} {
  func.func @_local_linear_kernel(%arg0: memref<8x16xf32, #tpu.memory_space<vmem>>, %arg1: memref<9x4x32xf32, #tpu.memory_space<vmem>>, %arg2: memref<1x288xf32, #tpu.memory_space<vmem>>, %arg3: memref<8x288xf32, #tpu.memory_space<vmem>>, %arg4: memref<16x288xf32, #tpu.memory_space<vmem>>) attributes {dimension_semantics = [], scalar_prefetch = 0 : i64, scratch_operands = 1 : i64, tpu.core_type = #tpu.core_type<tc>} {
    %cst = arith.constant 0.000000e+00 : f32
    %0 = vector.broadcast %cst : f32 to vector<16x288xf32>
    %c0 = arith.constant 0 : index
    %c0_0 = arith.constant 0 : index
    %1 = vector.load %arg4[%c0, %c0_0] : memref<16x288xf32, #tpu.memory_space<vmem>>, vector<16x288xf32>
    tpu.vector_store %arg4[%c0, %c0_0], %0 {strides = array<i32>} : memref<16x288xf32, #tpu.memory_space<vmem>>, vector<16x288xf32>,
    %c0_1 = arith.constant 0 : index
    %c0_2 = arith.constant 0 : index
    %c0_3 = arith.constant 0 : index
    %2 = vector.load %arg1[%c0_1, %c0_2, %c0_3] : memref<9x4x32xf32, #tpu.memory_space<vmem>>, vector<1x4x32xf32>
    %3 = vector.shape_cast %2 : vector<1x4x32xf32> to vector<4x32xf32>
    %4 = vector.extract_strided_slice %3 {offsets = [2, 0], sizes = [2, 32], strides = [1, 1]} : vector<4x32xf32> to vector<2x32xf32>
    %c0_4 = arith.constant 0 : index
    %c0_5 = arith.constant 0 : index
    %5 = vector.load %arg4[%c0_4, %c0_5] : memref<16x288xf32, #tpu.memory_space<vmem>>, vector<2x32xf32>
    tpu.vector_store %arg4[%c0_4, %c0_5], %4 {strides = array<i32>} : memref<16x288xf32, #tpu.memory_space<vmem>>, vector<2x32xf32>,
    %c1 = arith.constant 1 : index
    %c0_6 = arith.constant 0 : index
    %c0_7 = arith.constant 0 : index
    %6 = vector.load %arg1[%c1, %c0_6, %c0_7] : memref<9x4x32xf32, #tpu.memory_space<vmem>>, vector<1x4x32xf32>
    %7 = vector.shape_cast %6 : vector<1x4x32xf32> to vector<4x32xf32>
    %c0_8 = arith.constant 0 : index
    %c32 = arith.constant 32 : index
    %8 = vector.load %arg4[%c0_8, %c32] : memref<16x288xf32, #tpu.memory_space<vmem>>, vector<4x32xf32>
    tpu.vector_store %arg4[%c0_8, %c32], %7 {strides = array<i32>} : memref<16x288xf32, #tpu.memory_space<vmem>>, vector<4x32xf32>,
    %c2 = arith.constant 2 : index
    %c0_9 = arith.constant 0 : index
    %c0_10 = arith.constant 0 : index
    %9 = vector.load %arg1[%c2, %c0_9, %c0_10] : memref<9x4x32xf32, #tpu.memory_space<vmem>>, vector<1x4x32xf32>
    %10 = vector.shape_cast %9 : vector<1x4x32xf32> to vector<4x32xf32>
    %c2_11 = arith.constant 2 : index
    %c64 = arith.constant 64 : index
    %11 = vector.load %arg4[%c2_11, %c64] : memref<16x288xf32, #tpu.memory_space<vmem>>, vector<4x32xf32>
    tpu.vector_store %arg4[%c2_11, %c64], %10 {strides = array<i32>} : memref<16x288xf32, #tpu.memory_space<vmem>>, vector<4x32xf32>,
    %c3 = arith.constant 3 : index
    %c0_12 = arith.constant 0 : index
    %c0_13 = arith.constant 0 : index
    %12 = vector.load %arg1[%c3, %c0_12, %c0_13] : memref<9x4x32xf32, #tpu.memory_space<vmem>>, vector<1x4x32xf32>
    %13 = vector.shape_cast %12 : vector<1x4x32xf32> to vector<4x32xf32>
    %c4 = arith.constant 4 : index
    %c96 = arith.constant 96 : index
    %14 = vector.load %arg4[%c4, %c96] : memref<16x288xf32, #tpu.memory_space<vmem>>, vector<4x32xf32>
    tpu.vector_store %arg4[%c4, %c96], %13 {strides = array<i32>} : memref<16x288xf32, #tpu.memory_space<vmem>>, vector<4x32xf32>,
    %c4_14 = arith.constant 4 : index
    %c0_15 = arith.constant 0 : index
    %c0_16 = arith.constant 0 : index
    %15 = vector.load %arg1[%c4_14, %c0_15, %c0_16] : memref<9x4x32xf32, #tpu.memory_space<vmem>>, vector<1x4x32xf32>
    %16 = vector.shape_cast %15 : vector<1x4x32xf32> to vector<4x32xf32>
    %c6 = arith.constant 6 : index
    %c128 = arith.constant 128 : index
    %17 = vector.load %arg4[%c6, %c128] : memref<16x288xf32, #tpu.memory_space<vmem>>, vector<4x32xf32>
    tpu.vector_store %arg4[%c6, %c128], %16 {strides = array<i32>} : memref<16x288xf32, #tpu.memory_space<vmem>>, vector<4x32xf32>,
    %c5 = arith.constant 5 : index
    %c0_17 = arith.constant 0 : index
    %c0_18 = arith.constant 0 : index
    %18 = vector.load %arg1[%c5, %c0_17, %c0_18] : memref<9x4x32xf32, #tpu.memory_space<vmem>>, vector<1x4x32xf32>
    %19 = vector.shape_cast %18 : vector<1x4x32xf32> to vector<4x32xf32>
    %c8 = arith.constant 8 : index
    %c160 = arith.constant 160 : index
    %20 = vector.load %arg4[%c8, %c160] : memref<16x288xf32, #tpu.memory_space<vmem>>, vector<4x32xf32>
    tpu.vector_store %arg4[%c8, %c160], %19 {strides = array<i32>} : memref<16x288xf32, #tpu.memory_space<vmem>>, vector<4x32xf32>,
    %c6_19 = arith.constant 6 : index
    %c0_20 = arith.constant 0 : index
    %c0_21 = arith.constant 0 : index
    %21 = vector.load %arg1[%c6_19, %c0_20, %c0_21] : memref<9x4x32xf32, #tpu.memory_space<vmem>>, vector<1x4x32xf32>
    %22 = vector.shape_cast %21 : vector<1x4x32xf32> to vector<4x32xf32>
    %c10 = arith.constant 10 : index
    %c192 = arith.constant 192 : index
    %23 = vector.load %arg4[%c10, %c192] : memref<16x288xf32, #tpu.memory_space<vmem>>, vector<4x32xf32>
    tpu.vector_store %arg4[%c10, %c192], %22 {strides = array<i32>} : memref<16x288xf32, #tpu.memory_space<vmem>>, vector<4x32xf32>,
    %c7 = arith.constant 7 : index
    %c0_22 = arith.constant 0 : index
    %c0_23 = arith.constant 0 : index
    %24 = vector.load %arg1[%c7, %c0_22, %c0_23] : memref<9x4x32xf32, #tpu.memory_space<vmem>>, vector<1x4x32xf32>
    %25 = vector.shape_cast %24 : vector<1x4x32xf32> to vector<4x32xf32>
    %c12 = arith.constant 12 : index
    %c224 = arith.constant 224 : index
    %26 = vector.load %arg4[%c12, %c224] : memref<16x288xf32, #tpu.memory_space<vmem>>, vector<4x32xf32>
    tpu.vector_store %arg4[%c12, %c224], %25 {strides = array<i32>} : memref<16x288xf32, #tpu.memory_space<vmem>>, vector<4x32xf32>,
    %c8_24 = arith.constant 8 : index
    %c0_25 = arith.constant 0 : index
    %c0_26 = arith.constant 0 : index
    %27 = vector.load %arg1[%c8_24, %c0_25, %c0_26] : memref<9x4x32xf32, #tpu.memory_space<vmem>>, vector<1x4x32xf32>
    %28 = vector.shape_cast %27 : vector<1x4x32xf32> to vector<4x32xf32>
    %29 = vector.extract_strided_slice %28 {offsets = [0, 0], sizes = [2, 32], strides = [1, 1]} : vector<4x32xf32> to vector<2x32xf32>
    %c14 = arith.constant 14 : index
    %c256 = arith.constant 256 : index
    %30 = vector.load %arg4[%c14, %c256] : memref<16x288xf32, #tpu.memory_space<vmem>>, vector<2x32xf32>
    tpu.vector_store %arg4[%c14, %c256], %29 {strides = array<i32>} : memref<16x288xf32, #tpu.memory_space<vmem>>, vector<2x32xf32>,
    %c0_27 = arith.constant 0 : index
    %c0_28 = arith.constant 0 : index
    %31 = vector.load %arg0[%c0_27, %c0_28] : memref<8x16xf32, #tpu.memory_space<vmem>>, vector<8x16xf32>
    %c0_29 = arith.constant 0 : index
    %c0_30 = arith.constant 0 : index
    %32 = vector.load %arg4[%c0_29, %c0_30] : memref<16x288xf32, #tpu.memory_space<vmem>>, vector<16x288xf32>
    %cst_31 = arith.constant dense<0.000000e+00> : vector<8x288xf32>
    %33 = tpu.matmul %31, %32, %cst_31 {dimension_numbers = #tpu.dot_dimension_numbers<[1], [0], [0], [1], [0, 0, 1, 1], [], []>} : vector<8x16xf32>, vector<16x288xf32>, vector<8x288xf32> -> vector<8x288xf32>
    %c0_32 = arith.constant 0 : index
    %c0_33 = arith.constant 0 : index
    %34 = vector.load %arg2[%c0_32, %c0_33] : memref<1x288xf32, #tpu.memory_space<vmem>>, vector<1x288xf32>
    %35 = vector.broadcast %34 : vector<1x288xf32> to vector<8x288xf32>
    %36 = arith.addf %33, %35 : vector<8x288xf32>
    %c0_34 = arith.constant 0 : index
    %c0_35 = arith.constant 0 : index
    %37 = vector.load %arg3[%c0_34, %c0_35] : memref<8x288xf32, #tpu.memory_space<vmem>>, vector<8x288xf32>
    tpu.vector_store %arg3[%c0_34, %c0_35], %36 {strides = array<i32>} : memref<8x288xf32, #tpu.memory_space<vmem>>, vector<8x288xf32>,
    return
  }
}

</mosaic_0001>

<llo_original>
// kernel: tpu_custom_call.1
$region0: #{tpu_custom_call.1}
  #allocation0 [shape = 'u32[]', space=smem, size = 0x4, offset = 0x4, fixed_abs, tag = 'smem constant byte address 0x4 - core index']
  #allocation1 [shape = 'u32[72,128]{1,0:T(1,128)}', space=vmem, size = 0x9000, scoped, tag = 'internal scratch']
  #allocation2 [shape = 'f32[16,288]{1,0:T(8,128)}', space=vmem, size = 0x6000, scoped, tag = 'scratch operand']
  %s0 = inlined_call_operand.hbm [shape: f32[8,16], index: 0, kind: input, shape index: {}]
  %s1 = inlined_call_operand.hbm [shape: f32[9,4,32], index: 1, kind: input, shape index: {}]
  %s2 = inlined_call_operand.hbm [shape: f32[1,288], index: 2, kind: input, shape index: {}]
  %s3 = inlined_call_operand.hbm [shape: f32[8,288], index: 3, kind: output, shape index: {}]
  %s4 = sld [smem:[#allocation0]]
  $region34: #{tpu_custom_call.1} parent=0
    _
  %s6 = ssub.s32 1, %s4
  %s7 = scalar_select 0, %s6, %s4
  $region1: #{tpu_custom_call.1} parent=0
    #allocation3 [shape = 'u8[4096]{0}', space=vmem, size = 0x1000, scoped, tag = 'input window, operand 0, single buffered']
    #allocation4 [shape = 's32[1]{0}', space=sflag, size = 0x4, scoped, tag = 'scoped memory for tpu_custom_call.1']
    #allocation5 [shape = 's32[1]{0}', space=sflag, size = 0x4, scoped, tag = 'scoped memory for tpu_custom_call.1']
    #allocation6 [shape = 'u8[18432]{0}', space=vmem, size = 0x4800, scoped, tag = 'input window, operand 1, single buffered']
    #allocation7 [shape = 's32[1]{0}', space=sflag, size = 0x4, scoped, tag = 'scoped memory for tpu_custom_call.1']
    #allocation8 [shape = 'u8[1536]{0}', space=vmem, size = 0x800, scoped, tag = 'input window, operand 2, single buffered']
    #allocation9 [shape = 'u8[12288]{0}', space=vmem, size = 0x3000, scoped, tag = 'output window, operand 0, single buffered']
    %8 = vsyncpa [#allocation4], 0
    %9 = vsyncpa [#allocation7], 0
    %10 = vsyncpa [#allocation5], 0
    // Predicated region
    $region2: #{tpu_custom_call.1} parent=1 // pred_check
      _
    $region3: #{tpu_custom_call.1} parent=1 // pred_check_branch
      %12 = sbr.rel (0) target = $region5
    $region4: #{tpu_custom_call.1} parent=1 // pred_region
      %14 = vsyncadd [#allocation4], 0
      %s16 = sshll.u32 %s0, 4
      %s17 = int_to_ptr.hbm [resolvable:$true] %s16
      %s18 = sshll.u32 [#allocation3], 4
      %s19 = int_to_ptr.vmem [resolvable:$true] %s18
      %21 = dma.hbm_to_vmem [thread:$0]  %s17, 128, %s19, [#allocation4]
    $region5: #{tpu_custom_call.1} parent=1 // pred_fallthru
      _
    // Predicated region
    $region6: #{tpu_custom_call.1} parent=1 // pred_check
      _
    $region7: #{tpu_custom_call.1} parent=1 // pred_check_branch
      %23 = sbr.rel (0) target = $region9
    $region8: #{tpu_custom_call.1} parent=1 // pred_region
      %25 = vsyncadd [#allocation7], 0
      %s26 = sshll.u32 %s1, 4
      %s27 = int_to_ptr.hbm [resolvable:$true] %s26
      %s28 = sshll.u32 [#allocation6], 4
      %s29 = int_to_ptr.vmem [resolvable:$true] %s28
      %34 = dma.hbm_to_vmem [thread:$0]  %s27, 576, %s29, [#allocation7], 64, 64, 4
    $region9: #{tpu_custom_call.1} parent=1 // pred_fallthru
      _
    // Predicated region
    $region10: #{tpu_custom_call.1} parent=1 // pred_check
      _
    $region11: #{tpu_custom_call.1} parent=1 // pred_check_branch
      %36 = sbr.rel (0) target = $region13
    $region12: #{tpu_custom_call.1} parent=1 // pred_region
      %38 = vsyncadd [#allocation7], 0
      %s40 = sshll.u32 %s2, 4
      %s41 = int_to_ptr.hbm [resolvable:$true] %s40
      %s42 = sshll.u32 [#allocation8], 4
      %s43 = int_to_ptr.vmem [resolvable:$true] %s42
      %45 = dma.hbm_to_vmem [thread:$0]  %s41, 48, %s43, [#allocation7]
    $region13: #{tpu_custom_call.1} parent=1 // pred_fallthru
      _
    // Predicated region
    $region14: #{tpu_custom_call.1} parent=1 // pred_check
      _
    $region15: #{tpu_custom_call.1} parent=1 // pred_check_branch
      %47 = sbr.rel (0) target = $region17
    $region16: #{tpu_custom_call.1} parent=1 // pred_region
      %49 = dma.done [#allocation4], 128
    $region17: #{tpu_custom_call.1} parent=1 // pred_fallthru
      _
    // Predicated region
    $region18: #{tpu_custom_call.1} parent=1 // pred_check
      _
    $region19: #{tpu_custom_call.1} parent=1 // pred_check_branch
      %51 = sbr.rel (0) target = $region21
    $region20: #{tpu_custom_call.1} parent=1 // pred_region
      %53 = dma.done [#allocation7], 576
    $region21: #{tpu_custom_call.1} parent=1 // pred_fallthru
      _
    // Predicated region
    $region22: #{tpu_custom_call.1} parent=1 // pred_check
      _
    $region23: #{tpu_custom_call.1} parent=1 // pred_check_branch
      %55 = sbr.rel (0) target = $region25
    $region24: #{tpu_custom_call.1} parent=1 // pred_region
      %57 = dma.done [#allocation7], 48
    $region25: #{tpu_custom_call.1} parent=1 // pred_fallthru
      _
    %58 = vst [vmem:[#allocation2] sm:$0xff] 0.0
    %59 = vst [vmem:[#allocation2 + $0x8] sm:$0xff] 0.0
    %vm60 = vcmask 261120
    %61 = vst.msk [vmem:[#allocation2 + $0x10] sm:$0xff] %vm60, 0.0
    %62 = vst [vmem:[#allocation2 + $0x18] sm:$0xff] 0.0
    %63 = vst [vmem:[#allocation2 + $0x20] sm:$0xff] 0.0
    %64 = vst.msk [vmem:[#allocation2 + $0x28] sm:$0xff] %vm60, 0.0
    %v65 = vld [vmem:[#allocation6] sm:$0xf]
    %v67 = vrot.slane %v65, 2
    %vm69 = vcmask 254976
    %70 = vst.msk [vmem:[#allocation2] sm:$0x3] %vm69, %v67
    %s71 = scalar_lea.vmem [#allocation6], 4
    %v72 = vld [vmem:[%s71] sm:$0xf]
    %74 = vrot.lane.b32.xlu0 %v72, 32
    %v75 = vpop.permute.xlu0 %74
    %vm77 = vcmask 519424
    %78 = vst.msk [vmem:[#allocation2] sm:$0xf] %vm77, %v75
    %s79 = scalar_lea.vmem [#allocation6], 8
    %v80 = vld [vmem:[%s79] sm:$0xf]
    %v82 = vrot.slane %v80, 6
    %83 = vrot.lane.b32.xlu0 %v82, 64
    %v84 = vpop.permute.xlu0 %83
    %vm86 = vcmask 783874
    %87 = vst.msk [vmem:[#allocation2] sm:$0x3c] %vm86, %v84
    %s88 = scalar_lea.vmem [#allocation6], 12
    %v89 = vld [vmem:[%s88] sm:$0xf]
    %v91 = vrot.slane %v89, 4
    %92 = vrot.lane.b32.xlu0 %v91, 96
    %v93 = vpop.permute.xlu0 %92
    %vm95 = vcmask 1048324
    %96 = vst.msk [vmem:[#allocation2] sm:$0xf0] %vm95, %v93
    %s97 = scalar_lea.vmem [#allocation6], 16
    %v98 = vld [vmem:[%s97] sm:$0xf]
    %v100 = vrot.slane %v98, 2
    %vm102 = vcmask 261126
    %103 = vst.msk [vmem:[#allocation2 + $0x8] sm:$0xc0] %vm102, %v100
    %104 = vst.msk [vmem:[#allocation2 + $0x20] sm:$0x3] %vm69, %v100
    %s105 = scalar_lea.vmem [#allocation6], 20
    %v106 = vld [vmem:[%s105] sm:$0xf]
    %108 = vrot.lane.b32.xlu0 %v106, 32
    %v109 = vpop.permute.xlu0 %108
    %111 = vst.msk [vmem:[#allocation2 + $0x20] sm:$0xf] %vm77, %v109
    %s112 = scalar_lea.vmem [#allocation6], 24
    %v113 = vld [vmem:[%s112] sm:$0xf]
    %v115 = vrot.slane %v113, 6
    %116 = vrot.lane.b32.xlu0 %v115, 64
    %v117 = vpop.permute.xlu0 %116
    %119 = vst.msk [vmem:[#allocation2 + $0x20] sm:$0x3c] %vm86, %v117
    %s120 = scalar_lea.vmem [#allocation6], 28
    %v121 = vld [vmem:[%s120] sm:$0xf]
    %v123 = vrot.slane %v121, 4
    %124 = vrot.lane.b32.xlu0 %v123, 96
    %v125 = vpop.permute.xlu0 %124
    %127 = vst.msk [vmem:[#allocation2 + $0x20] sm:$0xf0] %vm95, %v125
    %s128 = scalar_lea.vmem [#allocation6], 32
    %v129 = vld [vmem:[%s128] sm:$0xf]
    %v131 = vrot.slane %v129, 2
    %133 = vst.msk [vmem:[#allocation2 + $0x28] sm:$0xc0] %vm102, %v131
    %v134 = vld [vmem:[#allocation3] sm:$0xff]
    %v135 = vld [vmem:[#allocation2] sm:$0xff]
    %v136 = vld [vmem:[#allocation2 + $0x8] sm:$0xff]
    %v137 = vld [vmem:[#allocation2 + $0x10] sm:$0xff]
    %v138 = vld [vmem:[#allocation2 + $0x18] sm:$0xff]
    %v139 = vld [vmem:[#allocation2 + $0x20] sm:$0xff]
    %v140 = vld [vmem:[#allocation2 + $0x28] sm:$0xff]
    %v141 = vld [vmem:[#allocation8] sm:$0x7]
    %v143 = vperm.slane %v141, 0
    %v144 = vperm.slane %v141, 1
    %v145 = vperm.slane %v141, 2
    %vm149 = vcmask 130048
    %v151 = vsel %vm149, %v134, 0
    %153 = vmatpush.msra.mxu0 0.0
    %154 = vmatpush.msra.mxu0 0.0
    %155 = vmatpush.msra.mxu0 0.0
    %156 = vmatpush.msra.mxu0 0.0
    %157 = vmatpush.msra.mxu0 0.0
    %158 = vmatpush.msra.mxu0 0.0
    %159 = vmatpush.msra.mxu0 0.0
    %160 = vmatpush.msra.mxu0 0.0
    %161 = vmatpush.msra.mxu0 0.0
    %162 = vmatpush.msra.mxu0 0.0
    %163 = vmatpush.msra.mxu0 0.0
    %164 = vmatpush.msra.mxu0 0.0
    %165 = vmatpush.msra.mxu0 0.0
    %166 = vmatpush.msra.mxu0 0.0
    %167 = vmatpush.msra.mxu0 %v138
    %168 = vmatpush.msra.mxu0 %v135
    %169 = vmatmul.f32.gmra.mxu0 %v151
    %v170 = vpop.f32.mrf.mxu0
    %v171 = vadd.f32 %v143, %v170
    %172 = vdwg.mxu0
    %173 = vmatpush.msra.mxu0 0.0
    %174 = vmatpush.msra.mxu0 0.0
    %175 = vmatpush.msra.mxu0 0.0
    %176 = vmatpush.msra.mxu0 0.0
    %177 = vmatpush.msra.mxu0 0.0
    %178 = vmatpush.msra.mxu0 0.0
    %179 = vmatpush.msra.mxu0 0.0
    %180 = vmatpush.msra.mxu0 0.0
    %181 = vmatpush.msra.mxu0 0.0
    %182 = vmatpush.msra.mxu0 0.0
    %183 = vmatpush.msra.mxu0 0.0
    %184 = vmatpush.msra.mxu0 0.0
    %185 = vmatpush.msra.mxu0 0.0
    %186 = vmatpush.msra.mxu0 0.0
    %187 = vmatpush.msra.mxu0 %v139
    %188 = vmatpush.msra.mxu0 %v136
    %189 = vmatmul.f32.gmra.mxu0 %v151
    %v190 = vpop.f32.mrf.mxu0
    %v191 = vadd.f32 %v144, %v190
    %192 = vdwg.mxu0
    %193 = vmatpush.msra.mxu0 0.0
    %194 = vmatpush.msra.mxu0 0.0
    %195 = vmatpush.msra.mxu0 0.0
    %196 = vmatpush.msra.mxu0 0.0
    %197 = vmatpush.msra.mxu0 0.0
    %198 = vmatpush.msra.mxu0 0.0
    %199 = vmatpush.msra.mxu0 0.0
    %200 = vmatpush.msra.mxu0 0.0
    %201 = vmatpush.msra.mxu0 0.0
    %202 = vmatpush.msra.mxu0 0.0
    %203 = vmatpush.msra.mxu0 0.0
    %204 = vmatpush.msra.mxu0 0.0
    %205 = vmatpush.msra.mxu0 0.0
    %206 = vmatpush.msra.mxu0 0.0
    %207 = vmatpush.msra.mxu0 %v140
    %208 = vmatpush.msra.mxu0 %v137
    %209 = vmatmul.f32.gmra.mxu0 %v151
    %v210 = vpop.f32.mrf.mxu0
    %v211 = vadd.f32 %v145, %v210
    %212 = vdwg.mxu0
    %213 = vst [vmem:[#allocation9] sm:$0xff] %v171
    %214 = vst [vmem:[#allocation9 + $0x8] sm:$0xff] %v191
    %215 = vst.msk [vmem:[#allocation9 + $0x10] sm:$0xff] %vm60, %v211
    // Predicated region
    $region26: #{tpu_custom_call.1} parent=1 // pred_check
      _
    $region27: #{tpu_custom_call.1} parent=1 // pred_check_branch
      %217 = sbr.rel (0) target = $region29
    $region28: #{tpu_custom_call.1} parent=1 // pred_region
      %219 = vsyncadd [#allocation5], 0
      %s221 = sshll.u32 [#allocation9], 4
      %s222 = int_to_ptr.vmem [resolvable:$true] %s221
      %s223 = sshll.u32 %s3, 4
      %s224 = int_to_ptr.hbm [resolvable:$true] %s223
      %226 = dma.vmem_to_hbm [thread:$0]  %s222, 384, %s224, [#allocation5]
    $region29: #{tpu_custom_call.1} parent=1 // pred_fallthru
      _
    // Predicated region
    $region30: #{tpu_custom_call.1} parent=1 // pred_check
      _
    $region31: #{tpu_custom_call.1} parent=1 // pred_check_branch
      %228 = sbr.rel (0) target = $region33
    $region32: #{tpu_custom_call.1} parent=1 // pred_region
      %230 = dma.done [#allocation5], 384
    $region33: #{tpu_custom_call.1} parent=1 // pred_fallthru
      _
    %231 = vsyncpa [#allocation4], 1
    %232 = vsyncpa [#allocation7], 1
    %233 = vsyncpa [#allocation5], 1

</llo_original>
